<compile_context>
chip_gen: v7x
topology: tpu7x:2x2x1
jax: 0.10.0
libtpu: 0.0.40
codegen_flags: <defaults>
</compile_context>

<pallas_src>
import jax
import jax.numpy as jnp
from jax.experimental import pallas as pl
from jax.experimental.pallas import tpu as pltpu

_MIB = 1024 * 1024


# ---------------------------------------------------------------------------
# Pre-pass: project K and V once per batch; store K transposed, bf16, in HBM.
# ---------------------------------------------------------------------------
def kv_prepass_kernel(x_ref, wk_ref, bk_ref, wv_ref, bv_ref, kt_ref, v_ref):
    x = x_ref[0].astype(jnp.bfloat16)                                    # (C, TN)
    k = jnp.dot(wk_ref[...], x, preferred_element_type=jnp.float32) + bk_ref[...]
    v = jnp.dot(wv_ref[...], x, preferred_element_type=jnp.float32) + bv_ref[...]
    # One f32 XLU transpose per spatial block (pre-pass only) so the attention
    # hot loop needs no transposes at all.
    kt_ref[0] = k.T.astype(jnp.bfloat16)                                 # (TN, Cq_pad)
    v_ref[0] = v.astype(jnp.bfloat16)                                    # (C, TN)


# ---------------------------------------------------------------------------
# Attention + residual kernel (flash-style, ki is the reduction axis).
# ---------------------------------------------------------------------------
def hwhw_attention_kernel(x_ref, kt_ref, v_ref, wq_ref, bq_ref, gamma_ref,
                          out_ref, acc_ref, q_ref):
    ki = pl.program_id(2)

    @pl.when(ki == 0)
    def _init():
        acc_ref[...] = jnp.zeros_like(acc_ref)
        xq = x_ref[0].astype(jnp.bfloat16)                               # (C, TQ)
        q = jnp.dot(wq_ref[...], xq,
                    preferred_element_type=jnp.float32) + bq_ref[...]    # (Cq_pad, TQ)
        q_ref[...] = q.astype(jnp.bfloat16)

    # energy^T[j, i] = sum_c K[c, j_glob] * Q[c, i_glob]  (padded channels = 0)
    energy_t = jnp.dot(kt_ref[0], q_ref[...],
                       preferred_element_type=jnp.float32)               # (TK, TQ)
    attn_t = jax.nn.sigmoid(energy_t).astype(jnp.bfloat16)
    # out[c, i] += sum_j V[c, j] * attn[i, j] = sum_j V[c, j] * attn^T[j, i]
    acc_ref[...] += jnp.dot(v_ref[0], attn_t,
                            preferred_element_type=jnp.float32)          # (C, TQ)

    @pl.when(ki == pl.num_programs(2) - 1)
    def _finalize():
        out_ref[0] = gamma_ref[0] * acc_ref[...] + x_ref[0]


# ---------------------------------------------------------------------------
# Helpers.
# ---------------------------------------------------------------------------
def _pick_tile(hw, cap=512):
    """Largest multiple-of-128 tile (<= cap) dividing hw; full extent for small hw."""
    for t in range(cap, 127, -128):
        if hw % t == 0:
            return t
    if hw <= cap:
        # Full-extent block is always legal (not lane-dense, but correct).
        return hw
    # TODO(synk): pad HW to a 128 multiple in the wrapper and mask the tail.
    raise ValueError(f"H*W={hw} must be a multiple of 128 (or <= {cap}).")


def _default_vmem_cap_bytes():
    """Per-generation scoped-VMEM cap: ~3/4 of physical VMEM (96 MiB on
    v5e/v6e with 128 MiB, 48 MiB on v7x with 64 MiB); v7x-safe fallback."""
    try:
        phys = int(pltpu.get_tpu_info().vmem_capacity_bytes)
        return max(32 * _MIB, (phys * 3) // 4)
    except Exception:
        return 48 * _MIB


def _attn_vmem_bytes(C, cq_pad, tq, tk, cap):
    f32, b16 = 4, 2
    blocks = 2 * (C * tq * f32            # x block (Q projection + residual)
                  + tk * cq_pad * b16     # K^T block
                  + C * tk * b16          # V block
                  + C * tq * f32)         # out block
    weights = 2 * (cq_pad * C * b16 + cq_pad * f32)        # wq, bq (double-buffered)
    scratch = C * tq * f32 + cq_pad * tq * b16             # accumulator, cached Q
    interm = tk * tq * (f32 + b16) + C * tq * f32          # energy^T, attn^T, AV result
    est = blocks + weights + scratch + interm
    return int(min(max(2 * est, 32 * _MIB), cap))


def _prepass_vmem_bytes(C, cq_pad, tn, cap):
    f32, b16 = 4, 2
    blocks = 2 * (C * tn * f32 + tn * cq_pad * b16 + C * tn * b16)
    weights = 2 * (cq_pad * C * b16 + cq_pad * f32 + C * C * b16 + C * f32)
    interm = (cq_pad + C) * tn * (f32 + b16) + tn * cq_pad * b16
    est = blocks + weights + interm
    return int(min(max(2 * est, 32 * _MIB), cap))


# ---------------------------------------------------------------------------
# Forward wrapper.
# ---------------------------------------------------------------------------
def hwhw_forward(x_nchw, params, *, tq=None, tk=None, tn=None, vmem_cap_bytes=None):
    """x_nchw: (B, C, H, W) float32. Returns (B, C, H, W) float32."""
    B, C, H, W = x_nchw.shape
    HW = H * W
    wq, bq = params["wq"], params["bq"]       # (Cq_pad, C) bf16, (Cq_pad, 1) f32
    wk, bk = params["wk"], params["bk"]       # (Cq_pad, C) bf16, (Cq_pad, 1) f32
    wv, bv = params["wv"], params["bv"]       # (C, C) bf16,      (C, 1) f32
    gamma = params["gamma"]                   # (1,) f32 -> SMEM
    cq_pad = wq.shape[0]

    if vmem_cap_bytes is None:
        vmem_cap_bytes = _default_vmem_cap_bytes()

    if tn is None:
        tn = _pick_tile(HW)
    if tq is None:
        tq = _pick_tile(HW)
        # Megacore balance (v7x has 2 TensorCores): keep >= 2 parallel qi blocks
        # when a smaller 128-multiple tile divides HW.
        if B * (HW // tq) < 2:
            for t in (256, 128):
                if t < tq and HW % t == 0:
                    tq = t
                    break
    if tk is None:
        tk = _pick_tile(HW)
    assert HW % tq == 0 and HW % tk == 0 and HW % tn == 0, \
        "tile sizes must divide H*W"

    # NCHW is already (B, C, HW) in memory -> reshape only, no HBM transpose.
    x = x_nchw.reshape(B, C, HW)

    # ---- Pre-pass: K^T (B, HW, Cq_pad) bf16 and V (B, C, HW) bf16 ----------
    kt, v = pl.pallas_call(
        kv_prepass_kernel,
        out_shape=(jax.ShapeDtypeStruct((B, HW, cq_pad), jnp.bfloat16),
                   jax.ShapeDtypeStruct((B, C, HW), jnp.bfloat16)),
        grid_spec=pltpu.PrefetchScalarGridSpec(
            num_scalar_prefetch=0,
            grid=(B, HW // tn),
            in_specs=[
                pl.BlockSpec((1, C, tn), lambda b, n: (b, 0, n)),       # x
                pl.BlockSpec((cq_pad, C), lambda b, n: (0, 0)),         # wk (padded)
                pl.BlockSpec((cq_pad, 1), lambda b, n: (0, 0)),         # bk (padded)
                pl.BlockSpec((C, C), lambda b, n: (0, 0)),              # wv
                pl.BlockSpec((C, 1), lambda b, n: (0, 0)),              # bv
            ],
            out_specs=[
                pl.BlockSpec((1, tn, cq_pad), lambda b, n: (b, n, 0)),  # K^T
                pl.BlockSpec((1, C, tn), lambda b, n: (b, 0, n)),       # V
            ],
        ),
        compiler_params=pltpu.CompilerParams(
            dimension_semantics=("parallel", "parallel"),
            vmem_limit_bytes=_prepass_vmem_bytes(C, cq_pad, tn, vmem_cap_bytes),
        ),
    )(x, wk, bk, wv, bv)

    # ---- Attention + residual ----------------------------------------------
    # Note: wq/bq have constant index maps; pipeline_mode=pl.Buffered(1) is an
    # optional VMEM micro-opt (weights are <= ~0.5 MiB now that wkv is gone).
    out = pl.pallas_call(
        hwhw_attention_kernel,
        out_shape=jax.ShapeDtypeStruct((B, C, HW), jnp.float32),
        grid_spec=pltpu.PrefetchScalarGridSpec(
            num_scalar_prefetch=0,
            grid=(B, HW // tq, HW // tk),
            in_specs=[
                pl.BlockSpec((1, C, tq), lambda b, qi, ki: (b, 0, qi)),       # x
                pl.BlockSpec((1, tk, cq_pad), lambda b, qi, ki: (b, ki, 0)),  # K^T
                pl.BlockSpec((1, C, tk), lambda b, qi, ki: (b, 0, ki)),       # V
                pl.BlockSpec((cq_pad, C), lambda b, qi, ki: (0, 0)),          # wq
                pl.BlockSpec((cq_pad, 1), lambda b, qi, ki: (0, 0)),          # bq
                pl.BlockSpec(memory_space=pltpu.MemorySpace.SMEM),            # gamma
            ],
            out_specs=pl.BlockSpec((1, C, tq), lambda b, qi, ki: (b, 0, qi)),
            scratch_shapes=[
                pltpu.VMEM((C, tq), jnp.float32),          # output accumulator
                pltpu.VMEM((cq_pad, tq), jnp.bfloat16),    # cached Q block
            ],
        ),
        compiler_params=pltpu.CompilerParams(
            dimension_semantics=("parallel", "parallel", "arbitrary"),
            vmem_limit_bytes=_attn_vmem_bytes(C, cq_pad, tq, tk, vmem_cap_bytes),
        ),
    )(x, kt, v, wq, bq, gamma)

    return out.reshape(B, C, H, W)


# ---------------------------------------------------------------------------
# Pure-JAX reference (torch-shaped weights, f32 HIGHEST precision).
# ---------------------------------------------------------------------------
def reference(x, wq_oc, bq_o, wk_oc, bk_o, wv_oc, bv_o, gamma):
    B, C, H, W = x.shape
    HW = H * W
    prec = jax.lax.Precision.HIGHEST

    def conv1x1(x, w_oc, b_o):  # w_oc: (C_out, C_in)
        return jnp.einsum("oc,bchw->bohw", w_oc, x, precision=prec) \
            + b_o[None, :, None, None]

    proj_query = conv1x1(x, wq_oc, bq_o).reshape(B, -1, HW).transpose(0, 2, 1)
    proj_key = conv1x1(x, wk_oc, bk_o).reshape(B, -1, HW)
    energy = jnp.einsum("bik,bkj->bij", proj_query, proj_key, precision=prec)
    attention = jax.nn.sigmoid(energy)
    proj_value = conv1x1(x, wv_oc, bv_o).reshape(B, -1, HW)
    out = jnp.einsum("bcj,bij->bci", proj_value, attention, precision=prec)
    out = out.reshape(B, C, H, W)
    return gamma * out + x


def make_params(key, C, gamma_value=0.0):
    """Deterministic init. torch-shaped (C_out, C_in) weights + kernel packing:
    Cq = C//8 zero-padded to a 128 multiple (exact: padded Q/K channels are
    identically zero), weights pre-cast to bf16, biases kept f32."""
    Cq = C // 8
    cq_pad = max(128, ((Cq + 127) // 128) * 128)
    k1, k2, k3, k4, k5, k6 = jax.random.split(key, 6)
    scale = 1.0 / jnp.sqrt(jnp.float32(C))
    wq_oc = jax.random.normal(k1, (Cq, C), jnp.float32) * scale
    wk_oc = jax.random.normal(k2, (Cq, C), jnp.float32) * scale
    wv_oc = jax.random.normal(k3, (C, C), jnp.float32) * scale
    bq_o = jax.random.normal(k4, (Cq,), jnp.float32) * 0.1
    bk_o = jax.random.normal(k5, (Cq,), jnp.float32) * 0.1
    bv_o = jax.random.normal(k6, (C,), jnp.float32) * 0.1
    torch_params = (wq_oc, bq_o, wk_oc, bk_o, wv_oc, bv_o, jnp.float32(gamma_value))

    def pad_rows(w, rows):
        return jnp.zeros((rows, w.shape[1]), w.dtype).at[:w.shape[0]].set(w)

    def pad_bias(b, rows):
        return jnp.zeros((rows, 1), jnp.float32).at[:b.shape[0], 0].set(b)

    kernel_params = {
        "wq": pad_rows(wq_oc, cq_pad).astype(jnp.bfloat16),
        "bq": pad_bias(bq_o, cq_pad),
        "wk": pad_rows(wk_oc, cq_pad).astype(jnp.bfloat16),
        "bk": pad_bias(bk_o, cq_pad),
        "wv": wv_oc.astype(jnp.bfloat16),
        "bv": bv_o.reshape(C, 1),
        "gamma": jnp.full((1,), gamma_value, jnp.float32),
    }
    return torch_params, kernel_params


if __name__ == "__main__":
    key = jax.random.PRNGKey(0)
    kx, kp = jax.random.split(key)
    B, C, H, W = 2, 16, 16, 16          # Cq = 2, HW = 256
    x = jax.random.normal(kx, (B, C, H, W), jnp.float32)

    def max_err_and_scale(out, ref):
        err = float(jnp.max(jnp.abs(out - ref)))
        scale = float(jnp.maximum(jnp.max(jnp.abs(ref)), 1.0))
        return err, scale

    # gamma = 0 (nn.Parameter init): output must equal x exactly.
    torch_p0, kern_p0 = make_params(kp, C, gamma_value=0.0)
    out0 = jax.block_until_ready(hwhw_forward(x, kern_p0))
    ref0 = reference(x, *torch_p0)
    err0, _ = max_err_and_scale(out0, ref0)
    assert err0 <= 1e-5, f"gamma=0 mismatch: max abs err {err0}"

    # Non-zero gamma exercises the K/V pre-pass + tiled attention reduction
    # (tq=tk=tn=128 -> multi-block grid).  The kernel uses bf16 Q/K/V/attn with
    # f32 accumulation, so compare against the f32 reference with a tolerance
    # scaled by the output magnitude (per-element rtol is meaningless where the
    # residual output cancels toward zero).
    torch_p1, kern_p1 = make_params(kp, C, gamma_value=0.5)
    out1 = jax.block_until_ready(hwhw_forward(x, kern_p1, tq=128, tk=128, tn=128))
    ref1 = reference(x, *torch_p1)
    err1, scale1 = max_err_and_scale(out1, ref1)
    assert err1 <= 3e-2 * scale1, \
        f"gamma=0.5 mismatch: max abs err {err1} vs output scale {scale1}"

    print("KERNEL_OK")
</pallas_src>

<mosaic_0001>
module attributes {stable_mosaic.version = 11 : i64} {
  func.func @kv_prepass_kernel(%arg0: i32, %arg1: i32, %arg2: memref<1x16x256xf32, #tpu.memory_space<vmem>>, %arg3: memref<128x16xbf16, #tpu.memory_space<vmem>>, %arg4: memref<128x1xf32, #tpu.memory_space<vmem>>, %arg5: memref<16x16xbf16, #tpu.memory_space<vmem>>, %arg6: memref<16x1xf32, #tpu.memory_space<vmem>>, %arg7: memref<1x256x128xbf16, #tpu.memory_space<vmem>>, %arg8: memref<1x16x256xbf16, #tpu.memory_space<vmem>>) attributes {dimension_semantics = [#tpu.dimension_semantics<parallel>, #tpu.dimension_semantics<parallel>], iteration_bounds = array<i64: 2, 1>, scalar_prefetch = 0 : i64, scratch_operands = 0 : i64, tpu.core_type = #tpu.core_type<tc>, window_params = [{transform_indices = @transform_0, window_bounds = array<i64: 1, 16, 256>}, {pipeline_mode = #tpu.pipeline_mode<synchronous>, transform_indices = @transform_1, window_bounds = array<i64: 128, 16>}, {pipeline_mode = #tpu.pipeline_mode<synchronous>, transform_indices = @transform_2, window_bounds = array<i64: 128, 1>}, {pipeline_mode = #tpu.pipeline_mode<synchronous>, transform_indices = @transform_3, window_bounds = array<i64: 16, 16>}, {pipeline_mode = #tpu.pipeline_mode<synchronous>, transform_indices = @transform_4, window_bounds = array<i64: 16, 1>}, {transform_indices = @transform_5, window_bounds = array<i64: 1, 256, 128>}, {transform_indices = @transform_6, window_bounds = array<i64: 1, 16, 256>}]} {
    %c0 = arith.constant 0 : index
    %c0_0 = arith.constant 0 : index
    %c0_1 = arith.constant 0 : index
    %0 = vector.load %arg2[%c0, %c0_0, %c0_1] : memref<1x16x256xf32, #tpu.memory_space<vmem>>, vector<1x16x256xf32>
    %1 = vector.shape_cast %0 : vector<1x16x256xf32> to vector<16x256xf32>
    %2 = arith.truncf %1 : vector<16x256xf32> to vector<16x256xbf16>
    %c0_2 = arith.constant 0 : index
    %c0_3 = arith.constant 0 : index
    %3 = vector.load %arg3[%c0_2, %c0_3] : memref<128x16xbf16, #tpu.memory_space<vmem>>, vector<128x16xbf16>
    %cst = arith.constant dense<0.000000e+00> : vector<128x256xf32>
    %4 = tpu.matmul %3, %2, %cst {dimension_numbers = #tpu.dot_dimension_numbers<[1], [0], [0], [1], [0, 0, 1, 1], [], []>} : vector<128x16xbf16>, vector<16x256xbf16>, vector<128x256xf32> -> vector<128x256xf32>
    %c0_4 = arith.constant 0 : index
    %c0_5 = arith.constant 0 : index
    %5 = vector.load %arg4[%c0_4, %c0_5] : memref<128x1xf32, #tpu.memory_space<vmem>>, vector<128x1xf32>
    %6 = vector.broadcast %5 : vector<128x1xf32> to vector<128x256xf32>
    %7 = arith.addf %4, %6 : vector<128x256xf32>
    %c0_6 = arith.constant 0 : index
    %c0_7 = arith.constant 0 : index
    %8 = vector.load %arg5[%c0_6, %c0_7] : memref<16x16xbf16, #tpu.memory_space<vmem>>, vector<16x16xbf16>
    %cst_8 = arith.constant dense<0.000000e+00> : vector<16x256xf32>
    %9 = tpu.matmul %8, %2, %cst_8 {dimension_numbers = #tpu.dot_dimension_numbers<[1], [0], [0], [1], [0, 0, 1, 1], [], []>} : vector<16x16xbf16>, vector<16x256xbf16>, vector<16x256xf32> -> vector<16x256xf32>
    %c0_9 = arith.constant 0 : index
    %c0_10 = arith.constant 0 : index
    %10 = vector.load %arg6[%c0_9, %c0_10] : memref<16x1xf32, #tpu.memory_space<vmem>>, vector<16x1xf32>
    %11 = vector.broadcast %10 : vector<16x1xf32> to vector<16x256xf32>
    %12 = arith.addf %9, %11 : vector<16x256xf32>
    %13 = tpu.transpose %7, [1, 0] : vector<128x256xf32> -> vector<256x128xf32>
    %14 = arith.truncf %13 : vector<256x128xf32> to vector<256x128xbf16>
    %c0_11 = arith.constant 0 : index
    %c0_12 = arith.constant 0 : index
    %c0_13 = arith.constant 0 : index
    %15 = vector.load %arg7[%c0_11, %c0_12, %c0_13] : memref<1x256x128xbf16, #tpu.memory_space<vmem>>, vector<1x256x128xbf16>
    %16 = vector.shape_cast %15 : vector<1x256x128xbf16> to vector<256x128xbf16>
    %17 = vector.shape_cast %14 : vector<256x128xbf16> to vector<1x256x128xbf16>
    tpu.vector_store %arg7[%c0_11, %c0_12, %c0_13], %17 {strides = array<i32>} : memref<1x256x128xbf16, #tpu.memory_space<vmem>>, vector<1x256x128xbf16>,
    %18 = arith.truncf %12 : vector<16x256xf32> to vector<16x256xbf16>
    %c0_14 = arith.constant 0 : index
    %c0_15 = arith.constant 0 : index
    %c0_16 = arith.constant 0 : index
    %19 = vector.load %arg8[%c0_14, %c0_15, %c0_16] : memref<1x16x256xbf16, #tpu.memory_space<vmem>>, vector<1x16x256xbf16>
    %20 = vector.shape_cast %19 : vector<1x16x256xbf16> to vector<16x256xbf16>
    %21 = vector.shape_cast %18 : vector<16x256xbf16> to vector<1x16x256xbf16>
    tpu.vector_store %arg8[%c0_14, %c0_15, %c0_16], %21 {strides = array<i32>} : memref<1x16x256xbf16, #tpu.memory_space<vmem>>, vector<1x16x256xbf16>,
    return
  }
  func.func @transform_0(%arg0: i32, %arg1: i32) -> (i32, i32, i32) {
    %c0_i32 = arith.constant 0 : i32
    %c0_i32_0 = arith.constant 0 : i32
    return %arg0, %c0_i32, %arg1 : i32, i32, i32
  }
  func.func @transform_1(%arg0: i32, %arg1: i32) -> (i32, i32) {
    %c0_i32 = arith.constant 0 : i32
    %c0_i32_0 = arith.constant 0 : i32
    %c0_i32_1 = arith.constant 0 : i32
    return %c0_i32, %c0_i32_0 : i32, i32
  }
  func.func @transform_2(%arg0: i32, %arg1: i32) -> (i32, i32) {
    %c0_i32 = arith.constant 0 : i32
    %c0_i32_0 = arith.constant 0 : i32
    %c0_i32_1 = arith.constant 0 : i32
    return %c0_i32, %c0_i32_0 : i32, i32
  }
  func.func @transform_3(%arg0: i32, %arg1: i32) -> (i32, i32) {
    %c0_i32 = arith.constant 0 : i32
    %c0_i32_0 = arith.constant 0 : i32
    %c0_i32_1 = arith.constant 0 : i32
    return %c0_i32, %c0_i32_0 : i32, i32
  }
  func.func @transform_4(%arg0: i32, %arg1: i32) -> (i32, i32) {
    %c0_i32 = arith.constant 0 : i32
    %c0_i32_0 = arith.constant 0 : i32
    %c0_i32_1 = arith.constant 0 : i32
    return %c0_i32, %c0_i32_0 : i32, i32
  }
  func.func @transform_5(%arg0: i32, %arg1: i32) -> (i32, i32, i32) {
    %c0_i32 = arith.constant 0 : i32
    %c0_i32_0 = arith.constant 0 : i32
    return %arg0, %arg1, %c0_i32 : i32, i32, i32
  }
  func.func @transform_6(%arg0: i32, %arg1: i32) -> (i32, i32, i32) {
    %c0_i32 = arith.constant 0 : i32
    %c0_i32_0 = arith.constant 0 : i32
    return %arg0, %c0_i32, %arg1 : i32, i32, i32
  }
}

</mosaic_0001>

<llo_original>
// kernel: tpu_custom_call.1
$region0: #{tpu_custom_call.1}
  #allocation0 [shape = 'u32[]', space=smem, size = 0x4, offset = 0x4, fixed_abs, tag = 'smem constant byte address 0x4 - core index']
  #allocation1 [shape = 'u32[144,128]{1,0:T(1,128)}', space=vmem, size = 0x12000, scoped, tag = 'internal scratch']
  %s0 = inlined_call_operand.vmem [shape: f32[2,16,256], index: 0, kind: input, shape index: {}]
  %s1 = inlined_call_operand.vmem [shape: bf16[128,16], index: 1, kind: input, shape index: {}]
  %s2 = inlined_call_operand.vmem [shape: f32[128,1], index: 2, kind: input, shape index: {}]
  %s3 = inlined_call_operand.vmem [shape: bf16[16,16], index: 3, kind: input, shape index: {}]
  %s4 = inlined_call_operand.vmem [shape: f32[16,1], index: 4, kind: input, shape index: {}]
  %s5 = inlined_call_operand.hbm [shape: bf16[2,256,128], index: 5, kind: output, shape index: {0}]
  %s6 = inlined_call_operand.hbm [shape: bf16[2,16,256], index: 6, kind: output, shape index: {1}]
  %7 = xla_tuple %s5, %s6
  %s8 = sld [smem:[#allocation0]]
  $region61: #{tpu_custom_call.1} parent=0
    _
  %s10 = ssub.s32 1, %s8
  %s11 = scalar_select 0, %s10, %s8
  $region1: #{tpu_custom_call.1} parent=0
    #allocation2 [shape = 'u8[131072]{0}', space=vmem, size = 0x20000, scoped, tag = 'output window, operand 0']
    #allocation3 [shape = 's32[2]{0}', space=sflag, size = 0x8, scoped, tag = 'scoped memory for tpu_custom_call.1']
    #allocation4 [shape = 'u8[16384]{0}', space=vmem, size = 0x4000, scoped, tag = 'output window, operand 1']
    #allocation5 [shape = 's32[2]{0}', space=sflag, size = 0x8, scoped, tag = 'scoped memory for tpu_custom_call.1']
    %12 = vsyncpa [#allocation3], 0
    %s13 = scalar_lea.sflag [#allocation3], 1
    %14 = vsyncpa %s13, 0
    %15 = vsyncpa [#allocation5], 0
    %s16 = scalar_lea.sflag [#allocation5], 1
    %17 = vsyncpa %s16, 0
    loop: start=0, step=1, limit=4
    $region2: #{tpu_custom_call.1} parent=1 // loop_pre_header
      _
    $region3: #{tpu_custom_call.1} parent=1 // loop_header
      %s19 = sphi 0, %s23
      %p20 = scmp.ge.s32.totalorder %s19, 4
      %s26 = sphi 0, %s38
      %s27 = sphi 0, %s34
      %s28 = sphi 0, %s26
      %s29 = sphi 0, %s27
      %s30 = sphi 0, %s28
      %s31 = sphi 0, %s29
      %s43 = sphi 0, %s45
      %s46 = sphi 0, %s43
      %s47 = sphi 0, %s46
      %s63 = sphi 0, %s47
      %s67 = sphi 0, %s67
      %s69 = sphi 0, %s67
      %s70 = sphi 0, %s69
      %s84 = sphi 0, %s70
      %s88 = sphi 0, %s88
      %s90 = sphi 0, %s88
      %s91 = sphi 0, %s90
      %s105 = sphi 0, %s91
      %s109 = sphi 0, %s109
      %s111 = sphi 0, %s109
      %s112 = sphi 0, %s111
      %s126 = sphi 0, %s112
      %s130 = sphi 0, %s130
      %s132 = sphi 0, %s130
      %s133 = sphi 0, %s132
      %s147 = sphi 0, %s133
      %s155 = sphi 0, %s157
      %s158 = sphi 0, %s155
      %s159 = sphi 0, %s158
      %s175 = sphi 0, %s159
      %s183 = sphi 0, %s185
      %s186 = sphi 0, %s183
      %s187 = sphi 0, %s186
      %s203 = sphi 0, %s187
    $region4: #{tpu_custom_call.1} parent=1 // loop_header_branch
      %22 = sbr.rel (%p20) target = $region8
    $region5: #{tpu_custom_call.1} parent=1 // loop_body
      %s24 = ssub.s32 %s19, 1
      %s25 = ssub.s32 %s19, 2
      %s32 = sadd.s32 1, %s27
      %p33 = scmp.ge.s32.totalorder %s32, 1
      %s34 = scalar_select %p33, 0, %s32
      %s35 = sadd.s32 1, %s26
      %s36 = scalar_select %p33, %s35, %s26
      %p37 = scmp.ge.s32.totalorder %s36, 2
      %s38 = scalar_select %p37, 0, %s36
      %s39 = ssub.s32 %s26, %s38
      %s40 = ssub.s32 %s27, %s34
      %s41 = sor.u32 %s39, %s40
      %p42 = scmp.eq.s32.totalorder %s41, 0
      %s44 = sadd.s32 %s43, 1
      %s45 = scalar_select %p42, %s43, %s44
      %p48 = pneg %p42
      %p49 = scmp.eq.s32.totalorder %s19, 1
      %p50 = por %p48, %p49
      %p51 = scmp.ne.s32.totalorder %s43, %s46
      %p52 = scmp.eq.s32.totalorder %s19, 0
      %p53 = por %p51, %p52
      %p54 = scmp.ne.s32.totalorder %s43, %s46
      %p55 = scmp.eq.s32.totalorder %s24, 1
      %p56 = por %p54, %p55
      %p57 = scmp.ne.s32.totalorder %s46, %s47
      %p58 = scmp.eq.s32.totalorder %s24, 0
      %p59 = por %p57, %p58
      %p60 = scmp.ne.s32.totalorder %s46, %s47
      %p61 = scmp.eq.s32.totalorder %s25, 1
      %p62 = por %p60, %p61
      %p64 = scmp.ne.s32.totalorder %s47, %s63
      %p65 = scmp.eq.s32.totalorder %s25, 0
      %p66 = por %p64, %p65
      %s68 = sadd.s32 %s67, 1
      %p71 = scmp.eq.s32.totalorder %s19, 1
      %p72 = scmp.ne.s32.totalorder %s67, %s69
      %p73 = scmp.eq.s32.totalorder %s19, 0
      %p74 = por %p72, %p73
      %p75 = scmp.ne.s32.totalorder %s67, %s69
      %p76 = scmp.eq.s32.totalorder %s24, 1
      %p77 = por %p75, %p76
      %p78 = scmp.ne.s32.totalorder %s69, %s70
      %p79 = scmp.eq.s32.totalorder %s24, 0
      %p80 = por %p78, %p79
      %p81 = scmp.ne.s32.totalorder %s69, %s70
      %p82 = scmp.eq.s32.totalorder %s25, 1
      %p83 = por %p81, %p82
      %p85 = scmp.ne.s32.totalorder %s70, %s84
      %p86 = scmp.eq.s32.totalorder %s25, 0
      %p87 = por %p85, %p86
      %s89 = sadd.s32 %s88, 1
      %p92 = scmp.eq.s32.totalorder %s19, 1
      %p93 = scmp.ne.s32.totalorder %s88, %s90
      %p94 = scmp.eq.s32.totalorder %s19, 0
      %p95 = por %p93, %p94
      %p96 = scmp.ne.s32.totalorder %s88, %s90
      %p97 = scmp.eq.s32.totalorder %s24, 1
      %p98 = por %p96, %p97
      %p99 = scmp.ne.s32.totalorder %s90, %s91
      %p100 = scmp.eq.s32.totalorder %s24, 0
      %p101 = por %p99, %p100
      %p102 = scmp.ne.s32.totalorder %s90, %s91
      %p103 = scmp.eq.s32.totalorder %s25, 1
      %p104 = por %p102, %p103
      %p106 = scmp.ne.s32.totalorder %s91, %s105
      %p107 = scmp.eq.s32.totalorder %s25, 0
      %p108 = por %p106, %p107
      %s110 = sadd.s32 %s109, 1
      %p113 = scmp.eq.s32.totalorder %s19, 1
      %p114 = scmp.ne.s32.totalorder %s109, %s111
      %p115 = scmp.eq.s32.totalorder %s19, 0
      %p116 = por %p114, %p115
      %p117 = scmp.ne.s32.totalorder %s109, %s111
      %p118 = scmp.eq.s32.totalorder %s24, 1
      %p119 = por %p117, %p118
      %p120 = scmp.ne.s32.totalorder %s111, %s112
      %p121 = scmp.eq.s32.totalorder %s24, 0
      %p122 = por %p120, %p121
      %p123 = scmp.ne.s32.totalorder %s111, %s112
      %p124 = scmp.eq.s32.totalorder %s25, 1
      %p125 = por %p123, %p124
      %p127 = scmp.ne.s32.totalorder %s112, %s126
      %p128 = scmp.eq.s32.totalorder %s25, 0
      %p129 = por %p127, %p128
      %s131 = sadd.s32 %s130, 1
      %p134 = scmp.eq.s32.totalorder %s19, 1
      %p135 = scmp.ne.s32.totalorder %s130, %s132
      %p136 = scmp.eq.s32.totalorder %s19, 0
      %p137 = por %p135, %p136
      %p138 = scmp.ne.s32.totalorder %s130, %s132
      %p139 = scmp.eq.s32.totalorder %s24, 1
      %p140 = por %p138, %p139
      %p141 = scmp.ne.s32.totalorder %s132, %s133
      %p142 = scmp.eq.s32.totalorder %s24, 0
      %p143 = por %p141, %p142
      %p144 = scmp.ne.s32.totalorder %s132, %s133
      %p145 = scmp.eq.s32.totalorder %s25, 1
      %p146 = por %p144, %p145
      %p148 = scmp.ne.s32.totalorder %s133, %s147
      %p149 = scmp.eq.s32.totalorder %s25, 0
      %p150 = por %p148, %p149
      %s151 = ssub.s32 %s26, %s38
      %s152 = ssub.s32 %s27, %s34
      %s153 = sor.u32 %s151, %s152
      %p154 = scmp.eq.s32.totalorder %s153, 0
      %s156 = sadd.s32 %s155, 1
      %s157 = scalar_select %p154, %s155, %s156
      %p160 = pneg %p154
      %p161 = scmp.eq.s32.totalorder %s19, 1
      %p162 = por %p160, %p161
      %p163 = scmp.ne.s32.totalorder %s155, %s158
      %p164 = scmp.eq.s32.totalorder %s19, 0
      %p165 = por %p163, %p164
      %p166 = scmp.ne.s32.totalorder %s155, %s158
      %p167 = scmp.eq.s32.totalorder %s24, 1
      %p168 = por %p166, %p167
      %p169 = scmp.ne.s32.totalorder %s158, %s159
      %p170 = scmp.eq.s32.totalorder %s24, 0
      %p171 = por %p169, %p170
      %p172 = scmp.ne.s32.totalorder %s158, %s159
      %p173 = scmp.eq.s32.totalorder %s25, 1
      %p174 = por %p172, %p173
      %p176 = scmp.ne.s32.totalorder %s159, %s175
      %p177 = scmp.eq.s32.totalorder %s25, 0
      %p178 = por %p176, %p177
      %s179 = ssub.s32 %s26, %s38
      %s180 = ssub.s32 %s27, %s34
      %s181 = sor.u32 %s179, %s180
      %p182 = scmp.eq.s32.totalorder %s181, 0
      %s184 = sadd.s32 %s183, 1
      %s185 = scalar_select %p182, %s183, %s184
      %p188 = pneg %p182
      %p189 = scmp.eq.s32.totalorder %s19, 1
      %p190 = por %p188, %p189
      %p191 = scmp.ne.s32.totalorder %s183, %s186
      %p192 = scmp.eq.s32.totalorder %s19, 0
      %p193 = por %p191, %p192
      %p194 = scmp.ne.s32.totalorder %s183, %s186
      %p195 = scmp.eq.s32.totalorder %s24, 1
      %p196 = por %p194, %p195
      %p197 = scmp.ne.s32.totalorder %s186, %s187
      %p198 = scmp.eq.s32.totalorder %s24, 0
      %p199 = por %p197, %p198
      %p200 = scmp.ne.s32.totalorder %s186, %s187
      %p201 = scmp.eq.s32.totalorder %s25, 1
      %p202 = por %p200, %p201
      %p204 = scmp.ne.s32.totalorder %s187, %s203
      %p205 = scmp.eq.s32.totalorder %s25, 0
      %p206 = por %p204, %p205
      %p207 = scmp.le.s32.totalorder 1, %s19
      %p208 = scmp.lt.s32.totalorder %s19, 3
      %p209 = pnand %p207, %p208
      %p210 = pneg %p209
      // Predicated region
      $region9: #{tpu_custom_call.1} parent=5 // pred_check
        _
      $region10: #{tpu_custom_call.1} parent=5 // pred_check_branch
        %212 = sbr.rel (%p209) target = $region12
      $region11: #{tpu_custom_call.1} parent=5 // pred_region
        %s213 = ssub.s32 %s19, 1
        // Predicated region
        $region13: #{tpu_custom_call.1} parent=11 // pred_check
          %p214 = pneg %p80
        $region14: #{tpu_custom_call.1} parent=11 // pred_check_branch
          %216 = sbr.rel (%p214) target = $region16
        $region15: #{tpu_custom_call.1} parent=11 // pred_region
          _
        $region16: #{tpu_custom_call.1} parent=11 // pred_fallthru
          _
        // Predicated region
        $region17: #{tpu_custom_call.1} parent=11 // pred_check
          %p217 = pneg %p101
        $region18: #{tpu_custom_call.1} parent=11 // pred_check_branch
          %219 = sbr.rel (%p217) target = $region20
        $region19: #{tpu_custom_call.1} parent=11 // pred_region
          _
        $region20: #{tpu_custom_call.1} parent=11 // pred_fallthru
          _
        // Predicated region
        $region21: #{tpu_custom_call.1} parent=11 // pred_check
          %p220 = pneg %p122
        $region22: #{tpu_custom_call.1} parent=11 // pred_check_branch
          %222 = sbr.rel (%p220) target = $region24
        $region23: #{tpu_custom_call.1} parent=11 // pred_region
          _
        $region24: #{tpu_custom_call.1} parent=11 // pred_fallthru
          _
        // Predicated region
        $region25: #{tpu_custom_call.1} parent=11 // pred_check
          %p223 = pneg %p143
        $region26: #{tpu_custom_call.1} parent=11 // pred_check_branch
          %225 = sbr.rel (%p223) target = $region28
        $region27: #{tpu_custom_call.1} parent=11 // pred_region
          _
        $region28: #{tpu_custom_call.1} parent=11 // pred_fallthru
          _
      $region12: #{tpu_custom_call.1} parent=5 // pred_fallthru
        _
      %p226 = scmp.lt.s32.totalorder %s19, 2
      // Predicated region
      $region29: #{tpu_custom_call.1} parent=5 // pred_check
        %p227 = pneg %p226
      $region30: #{tpu_custom_call.1} parent=5 // pred_check_branch
        %229 = sbr.rel (%p227) target = $region32
      $region31: #{tpu_custom_call.1} parent=5 // pred_region
        // Predicated region
        $region33: #{tpu_custom_call.1} parent=31 // pred_check
          %p230 = pneg %p53
        $region34: #{tpu_custom_call.1} parent=31 // pred_check_branch
          %232 = sbr.rel (%p230) target = $region36
        $region35: #{tpu_custom_call.1} parent=31 // pred_region
          %s233 = smul.u32 2, %s27
          %p234 = scmp.lt.s32.totalorder %s26, 1
          %s235 = scalar_select %p234, %s26, 1
          %p236 = scmp.lt.s32.totalorder %s233, 1
          %s237 = scalar_select %p236, %s233, 1
          %s238 = smul.addr %s235, 4
          %s239 = sadd.s32 %s237, %s238
          %s240 = smul.addr %s239, 8
          %s241 = scalar_lea.vmem %s0, %s240
          %s242 = smul.u32 2, %s27
        $region36: #{tpu_custom_call.1} parent=31 // pred_fallthru
          _
      $region32: #{tpu_custom_call.1} parent=5 // pred_fallthru
        _
      %p243 = scmp.le.s32.totalorder 1, %s19
      %p244 = scmp.lt.s32.totalorder %s19, 3
      %p245 = pnand %p243, %p244
      %p246 = pneg %p245
      // Predicated region
      $region37: #{tpu_custom_call.1} parent=5 // pred_check
        _
      $region38: #{tpu_custom_call.1} parent=5 // pred_check_branch
        %248 = sbr.rel (%p245) target = $region40
      $region39: #{tpu_custom_call.1} parent=5 // pred_region
        %s249 = ssub.s32 %s19, 1
        %s250 = smul.u32 2, %s29
        %p251 = scmp.lt.s32.totalorder %s28, 1
        %s252 = scalar_select %p251, %s28, 1
        %p253 = scmp.lt.s32.totalorder %s250, 1
        %s254 = scalar_select %p253, %s250, 1
        %s255 = smul.addr %s252, 4
        %s256 = sadd.s32 %s254, %s255
        %s257 = smul.addr %s256, 8
        %s258 = scalar_lea.vmem %s0, %s257
        %p259 = pneg %p59
        %p260 = pneg %p56
        %p261 = pneg %p80
        %p262 = pneg %p77
        %p263 = pneg %p101
        %p264 = pneg %p98
        %p265 = pneg %p122
        %p266 = pneg %p119
        %p267 = pneg %p143
        %p268 = pneg %p140
        %p269 = pneg %p171
        %p270 = pneg %p168
        %s271 = sand.u32 %s158, 1
        %s272 = scalar_lea.sflag [#allocation3], %s271
        %s273 = sand.u32 %s158, 1
        %s274 = smul.addr %s273, 128
        %s275 = scalar_lea.vmem [#allocation2], %s274
        %p276 = pneg %p199
        %p277 = pneg %p196
        %s278 = sand.u32 %s186, 1
        %s279 = scalar_lea.sflag [#allocation5], %s278
        %s280 = sand.u32 %s186, 1
        %s281 = smul.addr %s280, 16
        %s282 = scalar_lea.vmem [#allocation4], %s281
        %s283 = smul.u32 2, %s29
        %p284 = scmp.lt.s32.totalorder %s28, 1
        %s285 = scalar_select %p284, %s28, 1
        %p286 = scmp.lt.s32.totalorder %s283, 1
        %s287 = scalar_select %p286, %s283, 1
        %s288 = smul.addr %s285, 4
        %s289 = sadd.s32 %s287, %s288
        %s290 = smul.addr %s289, 8
        %s291 = scalar_lea.vmem %s0, %s290
        %s292 = smul.u32 2, %s29
        %s293 = smul.u32 32, %s29
        %s294 = smul.u32 2, %s29
        %v296 = vld [vmem:[%s291] sm:$0xff]
        %v297 = vld [vmem:[%s291 + $0x8] sm:$0xff]
        %v298 = vld [vmem:[%s291 + $0x10] sm:$0xff]
        %v299 = vld [vmem:[%s291 + $0x18] sm:$0xff]
        %v300 = vpack.c.bf16 %v298, %v296
        %v301 = vpack.c.bf16 %v299, %v297
        %v302 = vld [vmem:[%s1] sm:$0xf]
        %v303 = vld [vmem:[%s1 + $0x4] sm:$0xf]
        %v304 = vld [vmem:[%s1 + $0x8] sm:$0xf]
        %v305 = vld [vmem:[%s1 + $0xc] sm:$0xf]
        %v306 = vld [vmem:[%s1 + $0x10] sm:$0xf]
        %v307 = vld [vmem:[%s1 + $0x14] sm:$0xf]
        %v308 = vld [vmem:[%s1 + $0x18] sm:$0xf]
        %v309 = vld [vmem:[%s1 + $0x1c] sm:$0xf]
        %v310 = vld [vmem:[%s1 + $0x20] sm:$0xf]
        %v311 = vld [vmem:[%s1 + $0x24] sm:$0xf]
        %v312 = vld [vmem:[%s1 + $0x28] sm:$0xf]
        %v313 = vld [vmem:[%s1 + $0x2c] sm:$0xf]
        %v314 = vld [vmem:[%s1 + $0x30] sm:$0xf]
        %v315 = vld [vmem:[%s1 + $0x34] sm:$0xf]
        %v316 = vld [vmem:[%s1 + $0x38] sm:$0xf]
        %v317 = vld [vmem:[%s1 + $0x3c] sm:$0xf]
        %v318 = vld [vmem:[%s2] sm:$0xff]
        %v319 = vld [vmem:[%s2 + $0x8] sm:$0xff]
        %v320 = vld [vmem:[%s2 + $0x10] sm:$0xff]
        %v321 = vld [vmem:[%s2 + $0x18] sm:$0xff]
        %v322 = vld [vmem:[%s2 + $0x20] sm:$0xff]
        %v323 = vld [vmem:[%s2 + $0x28] sm:$0xff]
        %v324 = vld [vmem:[%s2 + $0x30] sm:$0xff]
        %v325 = vld [vmem:[%s2 + $0x38] sm:$0xff]
        %v326 = vld [vmem:[%s2 + $0x40] sm:$0xff]
        %v327 = vld [vmem:[%s2 + $0x48] sm:$0xff]
        %v328 = vld [vmem:[%s2 + $0x50] sm:$0xff]
        %v329 = vld [vmem:[%s2 + $0x58] sm:$0xff]
        %v330 = vld [vmem:[%s2 + $0x60] sm:$0xff]
        %v331 = vld [vmem:[%s2 + $0x68] sm:$0xff]
        %v332 = vld [vmem:[%s2 + $0x70] sm:$0xff]
        %v333 = vld [vmem:[%s2 + $0x78] sm:$0xff]
        %335 = vset.pattern.permute.xlu0 0
        %336 = vperm.xlu0 %335, %v318
        %v337 = vpop.permute.xlu0 %336
        %340 = vset.pattern.permute.xlu0 0
        %341 = vperm.xlu0 %340, %v319
        %v342 = vpop.permute.xlu0 %341
        %345 = vset.pattern.permute.xlu0 0
        %346 = vperm.xlu0 %345, %v320
        %v347 = vpop.permute.xlu0 %346
        %350 = vset.pattern.permute.xlu0 0
        %351 = vperm.xlu0 %350, %v321
        %v352 = vpop.permute.xlu0 %351
        %355 = vset.pattern.permute.xlu0 0
        %356 = vperm.xlu0 %355, %v322
        %v357 = vpop.permute.xlu0 %356
        %360 = vset.pattern.permute.xlu0 0
        %361 = vperm.xlu0 %360, %v323
        %v362 = vpop.permute.xlu0 %361
        %365 = vset.pattern.permute.xlu0 0
        %366 = vperm.xlu0 %365, %v324
        %v367 = vpop.permute.xlu0 %366
        %370 = vset.pattern.permute.xlu0 0
        %371 = vperm.xlu0 %370, %v325
        %v372 = vpop.permute.xlu0 %371
        %375 = vset.pattern.permute.xlu0 0
        %376 = vperm.xlu0 %375, %v326
        %v377 = vpop.permute.xlu0 %376
        %380 = vset.pattern.permute.xlu0 0
        %381 = vperm.xlu0 %380, %v327
        %v382 = vpop.permute.xlu0 %381
        %385 = vset.pattern.permute.xlu0 0
        %386 = vperm.xlu0 %385, %v328
        %v387 = vpop.permute.xlu0 %386
        %390 = vset.pattern.permute.xlu0 0
        %391 = vperm.xlu0 %390, %v329
        %v392 = vpop.permute.xlu0 %391
        %395 = vset.pattern.permute.xlu0 0
        %396 = vperm.xlu0 %395, %v330
        %v397 = vpop.permute.xlu0 %396
        %400 = vset.pattern.permute.xlu0 0
        %401 = vperm.xlu0 %400, %v331
        %v402 = vpop.permute.xlu0 %401
        %405 = vset.pattern.permute.xlu0 0
        %406 = vperm.xlu0 %405, %v332
        %v407 = vpop.permute.xlu0 %406
        %410 = vset.pattern.permute.xlu0 0
        %411 = vperm.xlu0 %410, %v333
        %v412 = vpop.permute.xlu0 %411
        %v430 = vunpack.c.l.b16 %v302
        %v431 = vunpack.c.l.b16 %v303
        %v432 = vunpack.c.l.b16 %v304
        %v433 = vunpack.c.l.b16 %v305
        %v434 = vunpack.c.l.b16 %v306
        %v435 = vunpack.c.l.b16 %v307
        %v436 = vunpack.c.l.b16 %v308
        %v437 = vunpack.c.l.b16 %v309
        %v438 = vunpack.c.l.b16 %v310
        %v439 = vunpack.c.l.b16 %v311
        %v440 = vunpack.c.l.b16 %v312
        %v441 = vunpack.c.l.b16 %v313
        %v442 = vunpack.c.l.b16 %v314
        %v443 = vunpack.c.l.b16 %v315
        %v444 = vunpack.c.l.b16 %v316
        %v445 = vunpack.c.l.b16 %v317
        %v446 = vpack.c.b16 %v431, %v430
        %v447 = vpack.c.b16 %v433, %v432
        %v448 = vpack.c.b16 %v435, %v434
        %v449 = vpack.c.b16 %v437, %v436
        %v450 = vpack.c.b16 %v439, %v438
        %v451 = vpack.c.b16 %v441, %v440
        %v452 = vpack.c.b16 %v443, %v442
        %v453 = vpack.c.b16 %v445, %v444
        %vm454 = vcmask 130048
        %v456 = vsel %vm454, %v446, 0
        %v459 = vsel %vm454, %v447, 0
        %v462 = vsel %vm454, %v448, 0
        %v465 = vsel %vm454, %v449, 0
        %v468 = vsel %vm454, %v450, 0
        %v471 = vsel %vm454, %v451, 0
        %v474 = vsel %vm454, %v452, 0
        %v477 = vsel %vm454, %v453, 0
        %479 = vmatprep.subr.bf16.mxu0 %v301
        %480 = vmatpush1.bf16.msra.mxu0 %v300
        %481 = vmatprep.subr.bf16.mxu0 0
        %482 = vmatpush1.bf16.msra.mxu0 0
        %483 = vmatprep.subr.bf16.mxu0 0
        %484 = vmatpush1.bf16.msra.mxu0 0
        %485 = vmatprep.subr.bf16.mxu0 0
        %486 = vmatpush1.bf16.msra.mxu0 0
        %487 = vmatprep.subr.bf16.mxu0 0
        %488 = vmatpush1.bf16.msra.mxu0 0
        %489 = vmatprep.subr.bf16.mxu0 0
        %490 = vmatpush1.bf16.msra.mxu0 0
        %491 = vmatprep.subr.bf16.mxu0 0
        %492 = vmatpush1.bf16.msra.mxu0 0
        %493 = vmatprep.subr.bf16.mxu0 0
        %494 = vmatpush1.bf16.msra.mxu0 0
        %495 = vmatprep.subr.bf16.mxu0 0
        %496 = vmatpush1.bf16.msra.mxu0 0
        %497 = vmatprep.subr.bf16.mxu0 0
        %498 = vmatpush1.bf16.msra.mxu0 0
        %499 = vmatprep.subr.bf16.mxu0 0
        %500 = vmatpush1.bf16.msra.mxu0 0
        %501 = vmatprep.subr.bf16.mxu0 0
        %502 = vmatpush1.bf16.msra.mxu0 0
        %503 = vmatprep.subr.bf16.mxu0 0
        %504 = vmatpush1.bf16.msra.mxu0 0
        %505 = vmatprep.subr.bf16.mxu0 0
        %506 = vmatpush1.bf16.msra.mxu0 0
        %507 = vmatprep.subr.bf16.mxu0 0
        %508 = vmatpush1.bf16.msra.mxu0 0
        %509 = vmatprep.subr.bf16.mxu0 0
        %510 = vmatpush1.bf16.msra.mxu0 0
        %511 = vmatprep.mubr.bf16.mxu0 0
        %512 = vmatmul.mubr.bf16.gmra.mrb[0].mxu0 %v456
        %v513 = vpop.f32.mrb[0].mxu0
        %v514 = vadd.f32 %v337, %v513
        %v515 = vpop.f32.mrb[0].mxu0
        %v516 = vadd.f32 %v337, %v515
        %v517 = vpop.f32.mrb[0].mxu0
        %v518 = vadd.f32 %v342, %v517
        %v519 = vpop.f32.mrb[0].mxu0
        %v520 = vadd.f32 %v342, %v519
        %521 = vmatprep.mubr.bf16.mxu0 0
        %522 = vmatmul.mubr.bf16.gmra.mrb[0].mxu0 %v459
        %v523 = vpop.f32.mrb[0].mxu0
        %v524 = vadd.f32 %v347, %v523
        %v525 = vpop.f32.mrb[0].mxu0
        %v526 = vadd.f32 %v347, %v525
        %v527 = vpop.f32.mrb[0].mxu0
        %v528 = vadd.f32 %v352, %v527
        %v529 = vpop.f32.mrb[0].mxu0
        %v530 = vadd.f32 %v352, %v529
        %531 = vmatprep.mubr.bf16.mxu0 0
        %532 = vmatmul.mubr.bf16.gmra.mrb[0].mxu0 %v462
        %v533 = vpop.f32.mrb[0].mxu0
        %v534 = vadd.f32 %v357, %v533
        %v535 = vpop.f32.mrb[0].mxu0
        %v536 = vadd.f32 %v357, %v535
        %v537 = vpop.f32.mrb[0].mxu0
        %v538 = vadd.f32 %v362, %v537
        %v539 = vpop.f32.mrb[0].mxu0
        %v540 = vadd.f32 %v362, %v539
        %541 = vmatprep.mubr.bf16.mxu0 0
        %542 = vmatmul.mubr.bf16.gmra.mrb[0].mxu0 %v465
        %v543 = vpop.f32.mrb[0].mxu0
        %v544 = vadd.f32 %v367, %v543
        %v545 = vpop.f32.mrb[0].mxu0
        %v546 = vadd.f32 %v367, %v545
        %v547 = vpop.f32.mrb[0].mxu0
        %v548 = vadd.f32 %v372, %v547
        %v549 = vpop.f32.mrb[0].mxu0
        %v550 = vadd.f32 %v372, %v549
        %551 = vmatprep.mubr.bf16.mxu0 0
        %552 = vmatmul.mubr.bf16.gmra.mrb[0].mxu0 %v468
        %v553 = vpop.f32.mrb[0].mxu0
        %v554 = vadd.f32 %v377, %v553
        %v555 = vpop.f32.mrb[0].mxu0
        %v556 = vadd.f32 %v377, %v555
        %v557 = vpop.f32.mrb[0].mxu0
        %v558 = vadd.f32 %v382, %v557
        %v559 = vpop.f32.mrb[0].mxu0
        %v560 = vadd.f32 %v382, %v559
        %561 = vmatprep.mubr.bf16.mxu0 0
        %562 = vmatmul.mubr.bf16.gmra.mrb[0].mxu0 %v471
        %v563 = vpop.f32.mrb[0].mxu0
        %v564 = vadd.f32 %v387, %v563
        %v565 = vpop.f32.mrb[0].mxu0
        %v566 = vadd.f32 %v387, %v565
        %v567 = vpop.f32.mrb[0].mxu0
        %v568 = vadd.f32 %v392, %v567
        %v569 = vpop.f32.mrb[0].mxu0
        %v570 = vadd.f32 %v392, %v569
        %571 = vmatprep.mubr.bf16.mxu0 0
        %572 = vmatmul.mubr.bf16.gmra.mrb[0].mxu0 %v474
        %v573 = vpop.f32.mrb[0].mxu0
        %v574 = vadd.f32 %v397, %v573
        %v575 = vpop.f32.mrb[0].mxu0
        %v576 = vadd.f32 %v397, %v575
        %v577 = vpop.f32.mrb[0].mxu0
        %v578 = vadd.f32 %v402, %v577
        %v579 = vpop.f32.mrb[0].mxu0
        %v580 = vadd.f32 %v402, %v579
        %581 = vmatprep.mubr.bf16.mxu0 0
        %582 = vmatmul.mubr.bf16.gmra.mrb[0].mxu0 %v477
        %v583 = vpop.f32.mrb[0].mxu0
        %v584 = vadd.f32 %v407, %v583
        %v585 = vpop.f32.mrb[0].mxu0
        %v586 = vadd.f32 %v407, %v585
        %v587 = vpop.f32.mrb[0].mxu0
        %v588 = vadd.f32 %v412, %v587
        %v589 = vpop.f32.mrb[0].mxu0
        %v590 = vadd.f32 %v412, %v589
        %591 = vdwg.mxu0
        %v592 = vld [vmem:[%s3] sm:$0xf]
        %v593 = vld [vmem:[%s3 + $0x4] sm:$0xf]
        %v594 = vld [vmem:[%s4] sm:$0xff]
        %v595 = vld [vmem:[%s4 + $0x8] sm:$0xff]
        %597 = vset.pattern.permute.xlu0 0
        %598 = vperm.xlu0 %597, %v594
        %v599 = vpop.permute.xlu0 %598
        %602 = vset.pattern.permute.xlu0 0
        %603 = vperm.xlu0 %602, %v595
        %v604 = vpop.permute.xlu0 %603
        %v608 = vunpack.c.l.b16 %v592
        %v609 = vunpack.c.l.b16 %v593
        %v610 = vpack.c.b16 %v609, %v608
        %v612 = vsel %vm454, %v610, 0
        %614 = vmatprep.subr.bf16.mxu0 %v301
        %615 = vmatpush1.bf16.msra.mxu0 %v300
        %616 = vmatprep.subr.bf16.mxu0 0
        %617 = vmatpush1.bf16.msra.mxu0 0
        %618 = vmatprep.subr.bf16.mxu0 0
        %619 = vmatpush1.bf16.msra.mxu0 0
        %620 = vmatprep.subr.bf16.mxu0 0
        %621 = vmatpush1.bf16.msra.mxu0 0
        %622 = vmatprep.subr.bf16.mxu0 0
        %623 = vmatpush1.bf16.msra.mxu0 0
        %624 = vmatprep.subr.bf16.mxu0 0
        %625 = vmatpush1.bf16.msra.mxu0 0
        %626 = vmatprep.subr.bf16.mxu0 0
        %627 = vmatpush1.bf16.msra.mxu0 0
        %628 = vmatprep.subr.bf16.mxu0 0
        %629 = vmatpush1.bf16.msra.mxu0 0
        %630 = vmatprep.subr.bf16.mxu0 0
        %631 = vmatpush1.bf16.msra.mxu0 0
        %632 = vmatprep.subr.bf16.mxu0 0
        %633 = vmatpush1.bf16.msra.mxu0 0
        %634 = vmatprep.subr.bf16.mxu0 0
        %635 = vmatpush1.bf16.msra.mxu0 0
        %636 = vmatprep.subr.bf16.mxu0 0
        %637 = vmatpush1.bf16.msra.mxu0 0
        %638 = vmatprep.subr.bf16.mxu0 0
        %639 = vmatpush1.bf16.msra.mxu0 0
        %640 = vmatprep.subr.bf16.mxu0 0
        %641 = vmatpush1.bf16.msra.mxu0 0
        %642 = vmatprep.subr.bf16.mxu0 0
        %643 = vmatpush1.bf16.msra.mxu0 0
        %644 = vmatprep.subr.bf16.mxu0 0
        %645 = vmatpush1.bf16.msra.mxu0 0
        %646 = vmatprep.mubr.bf16.mxu0 0
        %647 = vmatmul.mubr.bf16.gmra.mrb[0].mxu0 %v612
        %v648 = vpop.f32.mrb[0].mxu0
        %v649 = vadd.f32 %v599, %v648
        %v650 = vpop.f32.mrb[0].mxu0
        %v651 = vadd.f32 %v599, %v650
        %v652 = vpop.f32.mrb[0].mxu0
        %v653 = vadd.f32 %v604, %v652
        %v654 = vpop.f32.mrb[0].mxu0
        %v655 = vadd.f32 %v604, %v654
        %656 = vdwg.mxu0
        %657 = vxpose.xlu0.b32.start [1/16] %v514, 128
        %658 = vxpose.xlu0.b32.cont [2/16] %v518, 128
        %659 = vxpose.xlu0.b32.cont [3/16] %v524, 128
        %660 = vxpose.xlu0.b32.cont [4/16] %v528, 128
        %661 = vxpose.xlu0.b32.cont [5/16] %v534, 128
        %662 = vxpose.xlu0.b32.cont [6/16] %v538, 128
        %663 = vxpose.xlu0.b32.cont [7/16] %v544, 128
        %664 = vxpose.xlu0.b32.cont [8/16] %v548, 128
        %665 = vxpose.xlu0.b32.cont [9/16] %v554, 128
        %666 = vxpose.xlu0.b32.cont [10/16] %v558, 128
        %667 = vxpose.xlu0.b32.cont [11/16] %v564, 128
        %668 = vxpose.xlu0.b32.cont [12/16] %v568, 128
        %669 = vxpose.xlu0.b32.cont [13/16] %v574, 128
        %670 = vxpose.xlu0.b32.cont [14/16] %v578, 128
        %671 = vxpose.xlu0.b32.cont [15/16] %v584, 128
        %672 = vxpose.xlu0.b32.end [16/16] %v588, 128
        %v673 = vpop.trf.xlu0
        %v674 = vpop.trf.xlu0
        %v675 = vpop.trf.xlu0
        %v676 = vpop.trf.xlu0
        %v677 = vpop.trf.xlu0
        %v678 = vpop.trf.xlu0
        %v679 = vpop.trf.xlu0
        %v680 = vpop.trf.xlu0
        %v681 = vpop.trf.xlu0
        %v682 = vpop.trf.xlu0
        %v683 = vpop.trf.xlu0
        %v684 = vpop.trf.xlu0
        %v685 = vpop.trf.xlu0
        %v686 = vpop.trf.xlu0
        %v687 = vpop.trf.xlu0
        %v688 = vpop.trf.xlu0
        %689 = vxpose.xlu0.b32.start [1/16] %v516, 128
        %690 = vxpose.xlu0.b32.cont [2/16] %v520, 128
        %691 = vxpose.xlu0.b32.cont [3/16] %v526, 128
        %692 = vxpose.xlu0.b32.cont [4/16] %v530, 128
        %693 = vxpose.xlu0.b32.cont [5/16] %v536, 128
        %694 = vxpose.xlu0.b32.cont [6/16] %v540, 128
        %695 = vxpose.xlu0.b32.cont [7/16] %v546, 128
        %696 = vxpose.xlu0.b32.cont [8/16] %v550, 128
        %697 = vxpose.xlu0.b32.cont [9/16] %v556, 128
        %698 = vxpose.xlu0.b32.cont [10/16] %v560, 128
        %699 = vxpose.xlu0.b32.cont [11/16] %v566, 128
        %700 = vxpose.xlu0.b32.cont [12/16] %v570, 128
        %701 = vxpose.xlu0.b32.cont [13/16] %v576, 128
        %702 = vxpose.xlu0.b32.cont [14/16] %v580, 128
        %703 = vxpose.xlu0.b32.cont [15/16] %v586, 128
        %704 = vxpose.xlu0.b32.end [16/16] %v590, 128
        %v705 = vpop.trf.xlu0
        %v706 = vpop.trf.xlu0
        %v707 = vpop.trf.xlu0
        %v708 = vpop.trf.xlu0
        %v709 = vpop.trf.xlu0
        %v710 = vpop.trf.xlu0
        %v711 = vpop.trf.xlu0
        %v712 = vpop.trf.xlu0
        %v713 = vpop.trf.xlu0
        %v714 = vpop.trf.xlu0
        %v715 = vpop.trf.xlu0
        %v716 = vpop.trf.xlu0
        %v717 = vpop.trf.xlu0
        %v718 = vpop.trf.xlu0
        %v719 = vpop.trf.xlu0
        %v720 = vpop.trf.xlu0
        %v721 = vpack.c.bf16 %v674, %v673
        %v722 = vpack.c.bf16 %v676, %v675
        %v723 = vpack.c.bf16 %v678, %v677
        %v724 = vpack.c.bf16 %v680, %v679
        %v725 = vpack.c.bf16 %v682, %v681
        %v726 = vpack.c.bf16 %v684, %v683
        %v727 = vpack.c.bf16 %v686, %v685
        %v728 = vpack.c.bf16 %v688, %v687
        %v729 = vpack.c.bf16 %v706, %v705
        %v730 = vpack.c.bf16 %v708, %v707
        %v731 = vpack.c.bf16 %v710, %v709
        %v732 = vpack.c.bf16 %v712, %v711
        %v733 = vpack.c.bf16 %v714, %v713
        %v734 = vpack.c.bf16 %v716, %v715
        %v735 = vpack.c.bf16 %v718, %v717
        %v736 = vpack.c.bf16 %v720, %v719
        %v753 = vunpack.c.l.b16 %v721
        %v754 = vunpack.c.h.b16 %v721
        %v755 = vunpack.c.l.b16 %v722
        %v756 = vunpack.c.h.b16 %v722
        %v757 = vunpack.c.l.b16 %v723
        %v758 = vunpack.c.h.b16 %v723
        %v759 = vunpack.c.l.b16 %v724
        %v760 = vunpack.c.h.b16 %v724
        %v761 = vunpack.c.l.b16 %v725
        %v762 = vunpack.c.h.b16 %v725
        %v763 = vunpack.c.l.b16 %v726
        %v764 = vunpack.c.h.b16 %v726
        %v765 = vunpack.c.l.b16 %v727
        %v766 = vunpack.c.h.b16 %v727
        %v767 = vunpack.c.l.b16 %v728
        %v768 = vunpack.c.h.b16 %v728
        %v769 = vunpack.c.l.b16 %v729
        %v770 = vunpack.c.h.b16 %v729
        %v771 = vunpack.c.l.b16 %v730
        %v772 = vunpack.c.h.b16 %v730
        %v773 = vunpack.c.l.b16 %v731
        %v774 = vunpack.c.h.b16 %v731
        %v775 = vunpack.c.l.b16 %v732
        %v776 = vunpack.c.h.b16 %v732
        %v777 = vunpack.c.l.b16 %v733
        %v778 = vunpack.c.h.b16 %v733
        %v779 = vunpack.c.l.b16 %v734
        %v780 = vunpack.c.h.b16 %v734
        %v781 = vunpack.c.l.b16 %v735
        %v782 = vunpack.c.h.b16 %v735
        %v783 = vunpack.c.l.b16 %v736
        %v784 = vunpack.c.h.b16 %v736
        %v785 = vpack.c.b16 %v753, %v753
        %v786 = vpack.c.b16 %v754, %v754
        %v787 = vpack.c.b16 %v755, %v755
        %v788 = vpack.c.b16 %v756, %v756
        %v789 = vpack.c.b16 %v757, %v757
        %v790 = vpack.c.b16 %v758, %v758
        %v791 = vpack.c.b16 %v759, %v759
        %v792 = vpack.c.b16 %v760, %v760
        %v793 = vpack.c.b16 %v761, %v761
        %v794 = vpack.c.b16 %v762, %v762
        %v795 = vpack.c.b16 %v763, %v763
        %v796 = vpack.c.b16 %v764, %v764
        %v797 = vpack.c.b16 %v765, %v765
        %v798 = vpack.c.b16 %v766, %v766
        %v799 = vpack.c.b16 %v767, %v767
        %v800 = vpack.c.b16 %v768, %v768
        %v801 = vpack.c.b16 %v769, %v769
        %v802 = vpack.c.b16 %v770, %v770
        %v803 = vpack.c.b16 %v771, %v771
        %v804 = vpack.c.b16 %v772, %v772
        %v805 = vpack.c.b16 %v773, %v773
        %v806 = vpack.c.b16 %v774, %v774
        %v807 = vpack.c.b16 %v775, %v775
        %v808 = vpack.c.b16 %v776, %v776
        %v809 = vpack.c.b16 %v777, %v777
        %v810 = vpack.c.b16 %v778, %v778
        %v811 = vpack.c.b16 %v779, %v779
        %v812 = vpack.c.b16 %v780, %v780
        %v813 = vpack.c.b16 %v781, %v781
        %v814 = vpack.c.b16 %v782, %v782
        %v815 = vpack.c.b16 %v783, %v783
        %v816 = vpack.c.b16 %v784, %v784
        %849 = vst [vmem:[%s275] sm:$0xf] %v785
        %850 = vst [vmem:[%s275 + $0x4] sm:$0xf] %v786
        %851 = vst [vmem:[%s275 + $0x8] sm:$0xf] %v787
        %852 = vst [vmem:[%s275 + $0xc] sm:$0xf] %v788
        %853 = vst [vmem:[%s275 + $0x10] sm:$0xf] %v789
        %854 = vst [vmem:[%s275 + $0x14] sm:$0xf] %v790
        %855 = vst [vmem:[%s275 + $0x18] sm:$0xf] %v791
        %856 = vst [vmem:[%s275 + $0x1c] sm:$0xf] %v792
        %857 = vst [vmem:[%s275 + $0x20] sm:$0xf] %v793
        %858 = vst [vmem:[%s275 + $0x24] sm:$0xf] %v794
        %859 = vst [vmem:[%s275 + $0x28] sm:$0xf] %v795
        %860 = vst [vmem:[%s275 + $0x2c] sm:$0xf] %v796
        %861 = vst [vmem:[%s275 + $0x30] sm:$0xf] %v797
        %862 = vst [vmem:[%s275 + $0x34] sm:$0xf] %v798
        %863 = vst [vmem:[%s275 + $0x38] sm:$0xf] %v799
        %864 = vst [vmem:[%s275 + $0x3c] sm:$0xf] %v800
        %865 = vst [vmem:[%s275 + $0x40] sm:$0xf] %v801
        %866 = vst [vmem:[%s275 + $0x44] sm:$0xf] %v802
        %867 = vst [vmem:[%s275 + $0x48] sm:$0xf] %v803
        %868 = vst [vmem:[%s275 + $0x4c] sm:$0xf] %v804
        %869 = vst [vmem:[%s275 + $0x50] sm:$0xf] %v805
        %870 = vst [vmem:[%s275 + $0x54] sm:$0xf] %v806
        %871 = vst [vmem:[%s275 + $0x58] sm:$0xf] %v807
        %872 = vst [vmem:[%s275 + $0x5c] sm:$0xf] %v808
        %873 = vst [vmem:[%s275 + $0x60] sm:$0xf] %v809
        %874 = vst [vmem:[%s275 + $0x64] sm:$0xf] %v810
        %875 = vst [vmem:[%s275 + $0x68] sm:$0xf] %v811
        %876 = vst [vmem:[%s275 + $0x6c] sm:$0xf] %v812
        %877 = vst [vmem:[%s275 + $0x70] sm:$0xf] %v813
        %878 = vst [vmem:[%s275 + $0x74] sm:$0xf] %v814
        %879 = vst [vmem:[%s275 + $0x78] sm:$0xf] %v815
        %880 = vst [vmem:[%s275 + $0x7c] sm:$0xf] %v816
        %v881 = vpack.c.bf16 %v653, %v649
        %v882 = vpack.c.bf16 %v655, %v651
        %v885 = vunpack.c.l.b16 %v881
        %v886 = vunpack.c.l.b16 %v882
        %v887 = vunpack.c.h.b16 %v881
        %v888 = vunpack.c.h.b16 %v882
        %v889 = vpack.c.b16 %v886, %v885
        %v890 = vpack.c.b16 %v888, %v887
        %893 = vst [vmem:[%s282] sm:$0xff] %v889
        %894 = vst [vmem:[%s282 + $0x8] sm:$0xff] %v890
        %s895 = sand.u32 %s158, 1
        %s896 = scalar_lea.sflag [#allocation3], %s895
        %s897 = sand.u32 %s158, 1
        %s898 = smul.addr %s897, 128
        %s899 = scalar_lea.vmem [#allocation2], %s898
        %s900 = sand.u32 %s186, 1
        %s901 = scalar_lea.sflag [#allocation5], %s900
        %s902 = sand.u32 %s186, 1
        %s903 = smul.addr %s902, 16
        %s904 = scalar_lea.vmem [#allocation4], %s903
        // Predicated region
        $region41: #{tpu_custom_call.1} parent=39 // pred_check
          %p905 = pneg %p168
        $region42: #{tpu_custom_call.1} parent=39 // pred_check_branch
          %907 = sbr.rel (%p905) target = $region44
        $region43: #{tpu_custom_call.1} parent=39 // pred_region
          %s908 = smul.u32 32, %s29
          %s910 = ssub.s32 2048, 2048
          %911 = vsyncadd %s896, %s910
          %s912 = smul.addr %s28, 32
          %s913 = sadd.s32 %s908, %s912
          %s914 = smul.addr %s913, 64
          %s915 = scalar_lea.hbm %s5, %s914
          %s916 = sshll.u32 %s899, 4
          %s917 = int_to_ptr.vmem [resolvable:$true] %s916
          %922 = dma.vmem_to_hbm [thread:$0]  %s917, 2048, %s915, %s896, 64, 64, 4
        $region44: #{tpu_custom_call.1} parent=39 // pred_fallthru
          _
        // Predicated region
        $region45: #{tpu_custom_call.1} parent=39 // pred_check
          %p923 = pneg %p196
        $region46: #{tpu_custom_call.1} parent=39 // pred_check_branch
          %925 = sbr.rel (%p923) target = $region48
        $region47: #{tpu_custom_call.1} parent=39 // pred_region
          %s926 = smul.u32 2, %s29
          %s928 = ssub.s32 256, 256
          %929 = vsyncadd %s901, %s928
          %s930 = smul.addr %s28, 4
          %s931 = sadd.s32 %s926, %s930
          %s932 = smul.addr %s931, 64
          %s933 = scalar_lea.hbm %s6, %s932
          %s934 = sshll.u32 %s904, 4
          %s935 = int_to_ptr.vmem [resolvable:$true] %s934
          %940 = dma.vmem_to_hbm [thread:$0]  %s935, 256, %s933, %s901, 128, 128, 8
        $region48: #{tpu_custom_call.1} parent=39 // pred_fallthru
          _
      $region40: #{tpu_custom_call.1} parent=5 // pred_fallthru
        _
      %p941 = scmp.le.s32.totalorder 2, %s19
      // Predicated region
      $region49: #{tpu_custom_call.1} parent=5 // pred_check
        %p942 = pneg %p941
      $region50: #{tpu_custom_call.1} parent=5 // pred_check_branch
        %944 = sbr.rel (%p942) target = $region52
      $region51: #{tpu_custom_call.1} parent=5 // pred_region
        %s945 = ssub.s32 %s19, 2
        // Predicated region
        $region53: #{tpu_custom_call.1} parent=51 // pred_check
          %p946 = pneg %p174
        $region54: #{tpu_custom_call.1} parent=51 // pred_check_branch
          %948 = sbr.rel (%p946) target = $region56
        $region55: #{tpu_custom_call.1} parent=51 // pred_region
          %s949 = sand.u32 %s159, 1
          %s950 = scalar_lea.sflag [#allocation3], %s949
          %s951 = sand.u32 %s159, 1
          %s952 = smul.addr %s951, 128
          %s953 = scalar_lea.vmem [#allocation2], %s952
          %954 = dma.done %s950, 2048
        $region56: #{tpu_custom_call.1} parent=51 // pred_fallthru
          _
        // Predicated region
        $region57: #{tpu_custom_call.1} parent=51 // pred_check
          %p955 = pneg %p202
        $region58: #{tpu_custom_call.1} parent=51 // pred_check_branch
          %957 = sbr.rel (%p955) target = $region60
        $region59: #{tpu_custom_call.1} parent=51 // pred_region
          %s958 = sand.u32 %s187, 1
          %s959 = scalar_lea.sflag [#allocation5], %s958
          %s960 = sand.u32 %s187, 1
          %s961 = smul.addr %s960, 16
          %s962 = scalar_lea.vmem [#allocation4], %s961
          %963 = dma.done %s959, 256
        $region60: #{tpu_custom_call.1} parent=51 // pred_fallthru
          _
      $region52: #{tpu_custom_call.1} parent=5 // pred_fallthru
        _
    $region6: #{tpu_custom_call.1} parent=1 // loop_footer
      %s23 = sadd.s32 1, %s19
    $region7: #{tpu_custom_call.1} parent=1 // loop_footer_branch
      %18 = sbr.rel target = $region3
    $region8: #{tpu_custom_call.1} parent=1 // loop_exit
      _
    %964 = vsyncpa [#allocation3], 1
    %s965 = scalar_lea.sflag [#allocation3], 1
    %966 = vsyncpa %s965, 1
    %967 = vsyncpa [#allocation5], 1
    %s968 = scalar_lea.sflag [#allocation5], 1
    %969 = vsyncpa %s968, 1

</llo_original>
